<compile_context>
chip_gen: v5e
topology: v5e:2x2
jax: 0.10.0
libtpu: 0.0.40
codegen_flags: <defaults>
</compile_context>

<pallas_src>
import jax
import jax.numpy as jnp
from jax.experimental import pallas as pl
from jax.experimental.pallas import tpu as pltpu


def _round_up(x, m):
    return (x + m - 1) // m * m


def _block_diag(w, p):
    """blockdiag(w, w, ..., w) with p copies, keeping dtype."""
    f, h = w.shape
    out = jnp.zeros((p * f, p * h), w.dtype)
    for i in range(p):
        out = out.at[i * f:(i + 1) * f, i * h:(i + 1) * h].set(w)
    return out


def _mlp_kernel(x_ref, w1_ref, b1_ref, w2_ref, b2_ref, o_ref):
    # x_ref: (TM, P*F)   w1_ref: (P*F, P*H)   b1_ref: (1, P*H)
    # w2_ref: (P*H, P*O) b2_ref: (1, P*O)     o_ref: (TM, P*O)
    x = x_ref[...]
    h = jnp.dot(x, w1_ref[...], preferred_element_type=jnp.float32)
    h = h + b1_ref[...].astype(jnp.float32)
    h = jnp.maximum(h, 0.0)                                        # ReLU
    # MXU-native operands for the 2nd matmul (bf16 when weights are bf16); f32 accumulation.
    out = jnp.dot(h.astype(w2_ref.dtype), w2_ref[...],
                  preferred_element_type=jnp.float32)
    out = out + b2_ref[...].astype(jnp.float32)
    o_ref[...] = out.astype(o_ref.dtype)


def predictive_decoder(fused_input, w1, b1, w2, b2, pred_seq_len, target_dim,
                       *, tile_m=8192):
    """fused_input: (B, S, fused_dim) -> (B, pred_seq_len, S, target_dim)."""
    B, S, F = fused_input.shape
    H = w1.shape[1]
    O = w2.shape[1]
    assert w1.shape[0] == F and w2.shape[0] == H
    assert O == pred_seq_len * target_dim

    M = B * S

    # Lane-packing factor: fold P consecutive rows into the 128-wide lane dim when F divides
    # 128 (the intended fused_dim=32 case gives P=4).  Fallback P=1 keeps the plain layout.
    P = 128 // F if (F <= 128 and 128 % F == 0) else 1

    # Pad rows so the packed row count is a multiple of 16 (safe sublane tile for f32 & bf16).
    Mp = _round_up(pl.cdiv(M, P), 16)          # packed rows (padded)
    M_pad = Mp * P                              # original rows (padded)
    x2d = fused_input.reshape(M, F)
    if M_pad != M:
        x2d = jnp.pad(x2d, ((0, M_pad - M), (0, 0)))
    xp = x2d.reshape(Mp, P * F)                 # free reshape: same row-major HBM layout

    # Block-diagonal weights / tiled biases so packed math == per-row math.
    if P > 1:
        w1p = _block_diag(w1, P)
        w2p = _block_diag(w2, P)
        b1p = jnp.tile(b1.reshape(1, H), (1, P))
        b2p = jnp.tile(b2.reshape(1, O), (1, P))
    else:
        w1p, w2p = w1, w2
        b1p, b2p = b1.reshape(1, H), b2.reshape(1, O)

    # Packed-row tile: multiple of 16, <= Mp, and capped so the grid has >= 2 steps whenever
    # possible (2-TensorCore sharding + real DMA/compute overlap).
    tm = max(16, _round_up(max(tile_m // P, 1), 16))
    tm = min(tm, max(16, _round_up(pl.cdiv(Mp, 2), 16)))
    tm = min(tm, Mp)
    grid = (pl.cdiv(Mp, tm),)

    x_isz = jnp.dtype(xp.dtype).itemsize
    w_isz = jnp.dtype(w1p.dtype).itemsize
    cost = pl.CostEstimate(
        flops=2 * Mp * ((P * F) * (P * H) + (P * H) * (P * O)),
        transcendentals=0,
        bytes_accessed=(Mp * P * (F + O)) * x_isz
        + (w1p.size + b1p.size + w2p.size + b2p.size) * w_isz,
    )

    out2d = pl.pallas_call(
        _mlp_kernel,
        out_shape=jax.ShapeDtypeStruct((Mp, P * O), fused_input.dtype),
        grid=grid,
        in_specs=[
            pl.BlockSpec((tm, P * F), lambda i: (i, 0)),   # streamed, lane-dense row tiles
            pl.BlockSpec((P * F, P * H), lambda i: (0, 0)),  # constant blocks -> VMEM-resident
            pl.BlockSpec((1, P * H), lambda i: (0, 0)),
            pl.BlockSpec((P * H, P * O), lambda i: (0, 0)),
            pl.BlockSpec((1, P * O), lambda i: (0, 0)),
        ],
        out_specs=pl.BlockSpec((tm, P * O), lambda i: (i, 0)),
        compiler_params=pltpu.CompilerParams(
            dimension_semantics=("parallel",)),            # megacore-shardable row axis
        cost_estimate=cost,
    )(xp, w1p, b1p, w2p, b2p)

    # Unpack rows (free, row-major), drop padding, then the module's required
    # view(B, S, L, T).permute(0, 2, 1, 3) -> (B, L, S, T) as XLA glue.
    out_rows = out2d.reshape(M_pad, O)[:M]
    return out_rows.reshape(B, S, pred_seq_len, target_dim).transpose(0, 2, 1, 3)


def _reference(x, w1, b1, w2, b2, L, T):
    B, S, F = x.shape
    h = jnp.maximum(
        x.reshape(B * S, F).astype(jnp.float32) @ w1.astype(jnp.float32)
        + b1.reshape(1, -1).astype(jnp.float32), 0.0)
    p = h @ w2.astype(jnp.float32) + b2.reshape(1, -1).astype(jnp.float32)
    return p.reshape(B, S, L, T).transpose(0, 2, 1, 3)


def _make_params(key, F, H, O, dtype):
    kx, kw1, kb1, kw2, kb2 = jax.random.split(key, 5)
    w1 = (jax.random.normal(kw1, (F, H), jnp.float32) * 0.1).astype(dtype)
    b1 = (jax.random.normal(kb1, (1, H), jnp.float32) * 0.1).astype(dtype)
    w2 = (jax.random.normal(kw2, (H, O), jnp.float32) * 0.1).astype(dtype)
    b2 = (jax.random.normal(kb2, (1, O), jnp.float32) * 0.1).astype(dtype)
    return kx, w1, b1, w2, b2


if __name__ == "__main__":
    # --- 1) Small f32 example consistent with the module's forward (P=4 lane packing). ---
    B, S, F, H, L, T = 2, 8, 32, 32, 4, 2
    kx, w1, b1, w2, b2 = _make_params(jax.random.PRNGKey(0), F, H, L * T, jnp.float32)
    x = jax.random.normal(kx, (B, S, F), jnp.float32)

    out = jax.block_until_ready(predictive_decoder(x, w1, b1, w2, b2, L, T))
    ref = _reference(x, w1, b1, w2, b2, L, T)
    assert out.shape == (B, L, S, T)
    # Tolerance covers default-precision (bf16-pass) MXU handling of f32 matmuls.
    assert jnp.allclose(out.astype(jnp.float32), ref, atol=1e-2, rtol=1e-2)

    # --- 2) Production-style bf16 path: multi-step grid, ragged last block, row padding. ---
    B2, S2, L2, T2 = 4, 450, 6, 3            # M=1800 -> 450 packed rows -> padded to 464
    kx2, w1b, b1b, w2b, b2b = _make_params(jax.random.PRNGKey(1), F, H, L2 * T2, jnp.bfloat16)
    x2 = jax.random.normal(kx2, (B2, S2, F), jnp.float32).astype(jnp.bfloat16)
    out2 = jax.block_until_ready(
        predictive_decoder(x2, w1b, b1b, w2b, b2b, L2, T2, tile_m=1024))
    ref2 = _reference(x2, w1b, b1b, w2b, b2b, L2, T2)
    assert out2.shape == (B2, L2, S2, T2)
    assert jnp.allclose(out2.astype(jnp.float32), ref2.astype(jnp.float32),
                        atol=3e-2, rtol=3e-2)

    # --- 3) f32 check at the same shapes (documented: ~2-3x slower than bf16 on the MXU). ---
    kx3, w1c, b1c, w2c, b2c = _make_params(jax.random.PRNGKey(2), F, H, L2 * T2, jnp.float32)
    x3 = jax.random.normal(kx3, (B2, S2, F), jnp.float32)
    out3 = jax.block_until_ready(
        predictive_decoder(x3, w1c, b1c, w2c, b2c, L2, T2, tile_m=1024))
    ref3 = _reference(x3, w1c, b1c, w2c, b2c, L2, T2)
    assert out3.shape == (B2, L2, S2, T2)
    assert jnp.allclose(out3.astype(jnp.float32), ref3, atol=1e-2, rtol=1e-2)

    print("KERNEL_OK")
</pallas_src>

<mosaic_0001>
module attributes {stable_mosaic.version = 11 : i64} {
  func.func @_mlp_kernel(%arg0: i32, %arg1: memref<16x128xf32, #tpu.memory_space<vmem>>, %arg2: memref<128x128xf32, #tpu.memory_space<vmem>>, %arg3: memref<1x128xf32, #tpu.memory_space<vmem>>, %arg4: memref<128x32xf32, #tpu.memory_space<vmem>>, %arg5: memref<1x32xf32, #tpu.memory_space<vmem>>, %arg6: memref<16x32xf32, #tpu.memory_space<vmem>>) attributes {dimension_semantics = [#tpu.dimension_semantics<parallel>], iteration_bounds = array<i64: 1>, scalar_prefetch = 0 : i64, scratch_operands = 0 : i64, tpu.core_type = #tpu.core_type<tc>, window_params = [{transform_indices = @transform_0, window_bounds = array<i64: 16, 128>}, {pipeline_mode = #tpu.pipeline_mode<synchronous>, transform_indices = @transform_1, window_bounds = array<i64: 128, 128>}, {pipeline_mode = #tpu.pipeline_mode<synchronous>, transform_indices = @transform_2, window_bounds = array<i64: 1, 128>}, {pipeline_mode = #tpu.pipeline_mode<synchronous>, transform_indices = @transform_3, window_bounds = array<i64: 128, 32>}, {pipeline_mode = #tpu.pipeline_mode<synchronous>, transform_indices = @transform_4, window_bounds = array<i64: 1, 32>}, {transform_indices = @transform_5, window_bounds = array<i64: 16, 32>}]} {
    %c0 = arith.constant 0 : index
    %c0_0 = arith.constant 0 : index
    %0 = vector.load %arg1[%c0, %c0_0] : memref<16x128xf32, #tpu.memory_space<vmem>>, vector<16x128xf32>
    %c0_1 = arith.constant 0 : index
    %c0_2 = arith.constant 0 : index
    %1 = vector.load %arg2[%c0_1, %c0_2] : memref<128x128xf32, #tpu.memory_space<vmem>>, vector<128x128xf32>
    %cst = arith.constant dense<0.000000e+00> : vector<16x128xf32>
    %2 = tpu.matmul %0, %1, %cst {dimension_numbers = #tpu.dot_dimension_numbers<[1], [0], [0], [1], [0, 0, 1, 1], [], []>} : vector<16x128xf32>, vector<128x128xf32>, vector<16x128xf32> -> vector<16x128xf32>
    %c0_3 = arith.constant 0 : index
    %c0_4 = arith.constant 0 : index
    %3 = vector.load %arg3[%c0_3, %c0_4] : memref<1x128xf32, #tpu.memory_space<vmem>>, vector<1x128xf32>
    %4 = vector.broadcast %3 : vector<1x128xf32> to vector<16x128xf32>
    %5 = arith.addf %2, %4 : vector<16x128xf32>
    %cst_5 = arith.constant 0.000000e+00 : f32
    %6 = vector.broadcast %cst_5 : f32 to vector<16x128xf32>
    %7 = arith.maximumf %5, %6 : vector<16x128xf32>
    %c0_6 = arith.constant 0 : index
    %c0_7 = arith.constant 0 : index
    %8 = vector.load %arg4[%c0_6, %c0_7] : memref<128x32xf32, #tpu.memory_space<vmem>>, vector<128x32xf32>
    %cst_8 = arith.constant dense<0.000000e+00> : vector<16x32xf32>
    %9 = tpu.matmul %7, %8, %cst_8 {dimension_numbers = #tpu.dot_dimension_numbers<[1], [0], [0], [1], [0, 0, 1, 1], [], []>} : vector<16x128xf32>, vector<128x32xf32>, vector<16x32xf32> -> vector<16x32xf32>
    %c0_9 = arith.constant 0 : index
    %c0_10 = arith.constant 0 : index
    %10 = vector.load %arg5[%c0_9, %c0_10] : memref<1x32xf32, #tpu.memory_space<vmem>>, vector<1x32xf32>
    %11 = vector.broadcast %10 : vector<1x32xf32> to vector<16x32xf32>
    %12 = arith.addf %9, %11 : vector<16x32xf32>
    %c0_11 = arith.constant 0 : index
    %c0_12 = arith.constant 0 : index
    %13 = vector.load %arg6[%c0_11, %c0_12] : memref<16x32xf32, #tpu.memory_space<vmem>>, vector<16x32xf32>
    tpu.vector_store %arg6[%c0_11, %c0_12], %12 {strides = array<i32>} : memref<16x32xf32, #tpu.memory_space<vmem>>, vector<16x32xf32>,
    return
  }
  func.func @transform_0(%arg0: i32) -> (i32, i32) {
    %c0_i32 = arith.constant 0 : i32
    %c0_i32_0 = arith.constant 0 : i32
    return %arg0, %c0_i32 : i32, i32
  }
  func.func @transform_1(%arg0: i32) -> (i32, i32) {
    %c0_i32 = arith.constant 0 : i32
    %c0_i32_0 = arith.constant 0 : i32
    %c0_i32_1 = arith.constant 0 : i32
    return %c0_i32, %c0_i32_0 : i32, i32
  }
  func.func @transform_2(%arg0: i32) -> (i32, i32) {
    %c0_i32 = arith.constant 0 : i32
    %c0_i32_0 = arith.constant 0 : i32
    %c0_i32_1 = arith.constant 0 : i32
    return %c0_i32, %c0_i32_0 : i32, i32
  }
  func.func @transform_3(%arg0: i32) -> (i32, i32) {
    %c0_i32 = arith.constant 0 : i32
    %c0_i32_0 = arith.constant 0 : i32
    %c0_i32_1 = arith.constant 0 : i32
    return %c0_i32, %c0_i32_0 : i32, i32
  }
  func.func @transform_4(%arg0: i32) -> (i32, i32) {
    %c0_i32 = arith.constant 0 : i32
    %c0_i32_0 = arith.constant 0 : i32
    %c0_i32_1 = arith.constant 0 : i32
    return %c0_i32, %c0_i32_0 : i32, i32
  }
  func.func @transform_5(%arg0: i32) -> (i32, i32) {
    %c0_i32 = arith.constant 0 : i32
    %c0_i32_0 = arith.constant 0 : i32
    return %arg0, %c0_i32 : i32, i32
  }
}

</mosaic_0001>

<llo_original>
// kernel: tpu_custom_call.1
$region0: #{tpu_custom_call.1}
  #allocation0 [shape = 'u32[]', space=smem, size = 0x4, offset = 0x4, fixed_abs, tag = 'smem constant byte address 0x4 - core index']
  #allocation1 [shape = 'u32[72,128]{1,0:T(1,128)}', space=vmem, size = 0x9000, scoped, tag = 'internal scratch']
  %s0 = inlined_call_operand.vmem [shape: f32[16,128], index: 0, kind: input, shape index: {}]
  %s1 = inlined_call_operand.vmem [shape: f32[128,128], index: 1, kind: input, shape index: {}]
  %s2 = inlined_call_operand.vmem [shape: f32[1,128], index: 2, kind: input, shape index: {}]
  %s3 = inlined_call_operand.vmem [shape: f32[128,32], index: 3, kind: input, shape index: {}]
  %s4 = inlined_call_operand.vmem [shape: f32[1,32], index: 4, kind: input, shape index: {}]
  %s5 = inlined_call_operand.hbm [shape: f32[16,32], index: 5, kind: output, shape index: {}]
  %s6 = sld [smem:[#allocation0]]
  $region30: #{tpu_custom_call.1} parent=0
    _
  %s8 = ssub.s32 1, %s6
  %s9 = scalar_select 0, %s8, %s6
  $region1: #{tpu_custom_call.1} parent=0
    #allocation2 [shape = 'u8[8192]{0}', space=vmem, size = 0x2000, scoped, tag = 'output window, operand 0, single buffered']
    #allocation3 [shape = 's32[1]{0}', space=sflag, size = 0x4, scoped, tag = 'scoped memory for tpu_custom_call.1']
    %10 = vsyncpa [#allocation3], 0
    // Predicated region
    $region2: #{tpu_custom_call.1} parent=1 // pred_check
      _
    $region3: #{tpu_custom_call.1} parent=1 // pred_check_branch
      %12 = sbr.rel (0) target = $region5
    $region4: #{tpu_custom_call.1} parent=1 // pred_region
      _
    $region5: #{tpu_custom_call.1} parent=1 // pred_fallthru
      _
    // Predicated region
    $region6: #{tpu_custom_call.1} parent=1 // pred_check
      _
    $region7: #{tpu_custom_call.1} parent=1 // pred_check_branch
      %14 = sbr.rel (0) target = $region9
    $region8: #{tpu_custom_call.1} parent=1 // pred_region
      _
    $region9: #{tpu_custom_call.1} parent=1 // pred_fallthru
      _
    // Predicated region
    $region10: #{tpu_custom_call.1} parent=1 // pred_check
      _
    $region11: #{tpu_custom_call.1} parent=1 // pred_check_branch
      %16 = sbr.rel (0) target = $region13
    $region12: #{tpu_custom_call.1} parent=1 // pred_region
      _
    $region13: #{tpu_custom_call.1} parent=1 // pred_fallthru
      _
    // Predicated region
    $region14: #{tpu_custom_call.1} parent=1 // pred_check
      _
    $region15: #{tpu_custom_call.1} parent=1 // pred_check_branch
      %18 = sbr.rel (0) target = $region17
    $region16: #{tpu_custom_call.1} parent=1 // pred_region
      _
    $region17: #{tpu_custom_call.1} parent=1 // pred_fallthru
      _
    // Predicated region
    $region18: #{tpu_custom_call.1} parent=1 // pred_check
      _
    $region19: #{tpu_custom_call.1} parent=1 // pred_check_branch
      %20 = sbr.rel (0) target = $region21
    $region20: #{tpu_custom_call.1} parent=1 // pred_region
      _
    $region21: #{tpu_custom_call.1} parent=1 // pred_fallthru
      _
    %v21 = vld [vmem:[%s0] sm:$0xff]
    %v22 = vld [vmem:[%s0 + $0x8] sm:$0xff]
    %v23 = vld [vmem:[%s1] sm:$0xff]
    %v24 = vld [vmem:[%s1 + $0x8] sm:$0xff]
    %v25 = vld [vmem:[%s1 + $0x10] sm:$0xff]
    %v26 = vld [vmem:[%s1 + $0x18] sm:$0xff]
    %v27 = vld [vmem:[%s1 + $0x20] sm:$0xff]
    %v28 = vld [vmem:[%s1 + $0x28] sm:$0xff]
    %v29 = vld [vmem:[%s1 + $0x30] sm:$0xff]
    %v30 = vld [vmem:[%s1 + $0x38] sm:$0xff]
    %v31 = vld [vmem:[%s1 + $0x40] sm:$0xff]
    %v32 = vld [vmem:[%s1 + $0x48] sm:$0xff]
    %v33 = vld [vmem:[%s1 + $0x50] sm:$0xff]
    %v34 = vld [vmem:[%s1 + $0x58] sm:$0xff]
    %v35 = vld [vmem:[%s1 + $0x60] sm:$0xff]
    %v36 = vld [vmem:[%s1 + $0x68] sm:$0xff]
    %v37 = vld [vmem:[%s1 + $0x70] sm:$0xff]
    %v38 = vld [vmem:[%s1 + $0x78] sm:$0xff]
    %v39 = vld [vmem:[%s2] sm:$0x1]
    %v41 = vperm.slane %v39, 0
    %43 = vmatpush.msra.mxu0 %v38
    %44 = vmatpush.msra.mxu0 %v37
    %45 = vmatpush.msra.mxu0 %v36
    %46 = vmatpush.msra.mxu0 %v35
    %47 = vmatpush.msra.mxu0 %v34
    %48 = vmatpush.msra.mxu0 %v33
    %49 = vmatpush.msra.mxu0 %v32
    %50 = vmatpush.msra.mxu0 %v31
    %51 = vmatpush.msra.mxu0 %v30
    %52 = vmatpush.msra.mxu0 %v29
    %53 = vmatpush.msra.mxu0 %v28
    %54 = vmatpush.msra.mxu0 %v27
    %55 = vmatpush.msra.mxu0 %v26
    %56 = vmatpush.msra.mxu0 %v25
    %57 = vmatpush.msra.mxu0 %v24
    %58 = vmatpush.msra.mxu0 %v23
    %59 = vmatmul.f32.gmra.mxu0 %v21
    %v60 = vpop.f32.mrf.mxu0
    %v61 = vadd.f32 %v41, %v60
    %62 = vmatmul.f32.gmra.mxu0 %v22
    %v63 = vpop.f32.mrf.mxu0
    %v64 = vadd.f32 %v41, %v63
    %65 = vdwg.mxu0
    %v66 = vmax.f32 %v61, 0.0
    %v67 = vmax.f32 %v64, 0.0
    %v68 = vld [vmem:[%s3] sm:$0xff]
    %v69 = vld [vmem:[%s3 + $0x8] sm:$0xff]
    %v70 = vld [vmem:[%s3 + $0x10] sm:$0xff]
    %v71 = vld [vmem:[%s3 + $0x18] sm:$0xff]
    %v72 = vld [vmem:[%s3 + $0x20] sm:$0xff]
    %v73 = vld [vmem:[%s3 + $0x28] sm:$0xff]
    %v74 = vld [vmem:[%s3 + $0x30] sm:$0xff]
    %v75 = vld [vmem:[%s3 + $0x38] sm:$0xff]
    %v76 = vld [vmem:[%s3 + $0x40] sm:$0xff]
    %v77 = vld [vmem:[%s3 + $0x48] sm:$0xff]
    %v78 = vld [vmem:[%s3 + $0x50] sm:$0xff]
    %v79 = vld [vmem:[%s3 + $0x58] sm:$0xff]
    %v80 = vld [vmem:[%s3 + $0x60] sm:$0xff]
    %v81 = vld [vmem:[%s3 + $0x68] sm:$0xff]
    %v82 = vld [vmem:[%s3 + $0x70] sm:$0xff]
    %v83 = vld [vmem:[%s3 + $0x78] sm:$0xff]
    %v84 = vld [vmem:[%s4] sm:$0x1]
    %v86 = vperm.slane %v84, 0
    %88 = vmatpush.msra.mxu0 %v83
    %89 = vmatpush.msra.mxu0 %v82
    %90 = vmatpush.msra.mxu0 %v81
    %91 = vmatpush.msra.mxu0 %v80
    %92 = vmatpush.msra.mxu0 %v79
    %93 = vmatpush.msra.mxu0 %v78
    %94 = vmatpush.msra.mxu0 %v77
    %95 = vmatpush.msra.mxu0 %v76
    %96 = vmatpush.msra.mxu0 %v75
    %97 = vmatpush.msra.mxu0 %v74
    %98 = vmatpush.msra.mxu0 %v73
    %99 = vmatpush.msra.mxu0 %v72
    %100 = vmatpush.msra.mxu0 %v71
    %101 = vmatpush.msra.mxu0 %v70
    %102 = vmatpush.msra.mxu0 %v69
    %103 = vmatpush.msra.mxu0 %v68
    %104 = vmatmul.f32.gmra.mxu0 %v66
    %v105 = vpop.f32.mrf.mxu0
    %v106 = vadd.f32 %v86, %v105
    %107 = vmatmul.f32.gmra.mxu0 %v67
    %v108 = vpop.f32.mrf.mxu0
    %v109 = vadd.f32 %v86, %v108
    %110 = vdwg.mxu0
    %vm111 = vcmask 261120
    %112 = vst.msk [vmem:[#allocation2] sm:$0xff] %vm111, %v106
    %113 = vst.msk [vmem:[#allocation2 + $0x8] sm:$0xff] %vm111, %v109
    // Predicated region
    $region22: #{tpu_custom_call.1} parent=1 // pred_check
      _
    $region23: #{tpu_custom_call.1} parent=1 // pred_check_branch
      %115 = sbr.rel (0) target = $region25
    $region24: #{tpu_custom_call.1} parent=1 // pred_region
      %117 = vsyncadd [#allocation3], 0
      %s118 = sshll.u32 [#allocation2], 4
      %s119 = int_to_ptr.vmem [resolvable:$true] %s118
      %s120 = sshll.u32 %s5, 4
      %s121 = int_to_ptr.hbm [resolvable:$true] %s120
      %126 = dma.vmem_to_hbm [thread:$0]  %s119, 256, %s121, [#allocation3], 128, 128, 8
    $region25: #{tpu_custom_call.1} parent=1 // pred_fallthru
      _
    // Predicated region
    $region26: #{tpu_custom_call.1} parent=1 // pred_check
      _
    $region27: #{tpu_custom_call.1} parent=1 // pred_check_branch
      %128 = sbr.rel (0) target = $region29
    $region28: #{tpu_custom_call.1} parent=1 // pred_region
      %130 = dma.done [#allocation3], 256
    $region29: #{tpu_custom_call.1} parent=1 // pred_fallthru
      _
    %131 = vsyncpa [#allocation3], 1

</llo_original>
